<compile_context>
chip_gen: v5e
topology: v5e:2x2
jax: 0.10.0
libtpu: 0.0.40
codegen_flags: <defaults>
</compile_context>

<pallas_src>
import jax
import jax.numpy as jnp
from jax.experimental import pallas as pl
from jax.experimental.pallas import tpu as pltpu


# ----------------------------- tile selection ------------------------------

def _pick_row_tile(rows, cap=256):
    # second-to-last block dim must be a multiple of 8 or the full extent
    if rows % 8 != 0:
        if rows < 8:
            return rows                       # tiny: full extent
        return min((rows // 8) * 8, cap)      # 8-aligned tile; tail clipped
    t = min(rows, cap)
    if t == rows and rows >= 16:
        # keep >= 2 row tiles so v7x's second TensorCore has parallel work
        t = max(8, ((rows // 2) // 8) * 8)
    return t


def _pick_hw_tile(hw, cap=4096):
    # last block dim must be a multiple of 128 or the full extent
    if hw < 128:
        return hw                             # tiny: full extent
    if hw % 128 == 0:
        return min(hw, cap)
    # large unaligned HW: 128-multiple tile, mask the tail (never full-extent)
    return min((hw // 128) * 128, cap)


# ------------------------- pass 1: pooled mean ------------------------------

def _make_pool_mean_kernel(hw, t_hw, hw_rem):
    """hw_rem = valid columns in the last HW tile (0 means fully aligned)."""
    if t_hw % 128 == 0:
        chunk_w = 128
        lane_chunks = t_hw // 128
    else:                                     # only when HW < 128 (tiny)
        chunk_w = t_hw
        lane_chunks = 1
    inv_hw = 1.0 / float(hw)
    need_mask = hw_rem != 0

    def _accum_full(x_ref, acc_ref):
        # streaming vld -> vadd per 128-lane chunk; constant vreg pressure
        for k in range(lane_chunks):
            acc_ref[...] += x_ref[:, k * chunk_w:(k + 1) * chunk_w].astype(
                jnp.float32)

    def _accum_tail(x_ref, acc_ref):
        full = hw_rem // chunk_w
        for k in range(full):
            acc_ref[...] += x_ref[:, k * chunk_w:(k + 1) * chunk_w].astype(
                jnp.float32)
        part = hw_rem - full * chunk_w
        if part:
            x = x_ref[:, full * chunk_w:(full + 1) * chunk_w].astype(
                jnp.float32)
            col = jax.lax.broadcasted_iota(jnp.int32, x.shape, 1)
            acc_ref[...] += jnp.where(col < part, x, jnp.zeros_like(x))
        # chunks entirely past hw_rem carry no valid data -> skipped

    def kernel(x_ref, pooled_ref, acc_ref):
        # x_ref:      (T_R, T_HW)     input tile
        # pooled_ref: (T_R, 1)        per-row mean (written at last HW step)
        # acc_ref:    (T_R, chunk_w)  f32 accumulator
        hw_idx = pl.program_id(1)
        last = pl.num_programs(1) - 1

        @pl.when(hw_idx == 0)
        def _init():
            acc_ref[...] = jnp.zeros_like(acc_ref)

        if need_mask:
            # mask cost only on the final tile; all earlier tiles are pure
            # load + add (keeps pass 1 HBM-bound, frees VALU slots)
            @pl.when(hw_idx != last)
            def _full():
                _accum_full(x_ref, acc_ref)

            @pl.when(hw_idx == last)
            def _tail():
                _accum_tail(x_ref, acc_ref)
        else:
            _accum_full(x_ref, acc_ref)

        @pl.when(hw_idx == last)
        def _finalize():
            pooled_ref[...] = acc_ref[...].sum(axis=-1, keepdims=True) * inv_hw

    return kernel


# ------------------------ pass 2: broadcast store ---------------------------

def _broadcast_kernel(y_ref, o_ref):
    # y_ref: (T_R, 1) f32 per-row constant; o_ref: (T_R, T_HW) lane-dense tile
    o_ref[...] = jnp.broadcast_to(y_ref[...], o_ref.shape).astype(o_ref.dtype)


# --------------------------------- wrapper ----------------------------------

def image_pool_forward(x, weight, bias, *, row_tile_cap=256, hw_tile_cap=4096):
    """x: (N, C, H, W); weight: (C, C, 1, 1); bias: (C,)."""
    N, C, H, W = x.shape
    HW = H * W
    rows = N * C
    x2d = x.reshape(rows, HW)

    t_r = _pick_row_tile(rows, row_tile_cap)
    t_hw = _pick_hw_tile(HW, hw_tile_cap)
    row_tiles = pl.cdiv(rows, t_r)
    hw_tiles = pl.cdiv(HW, t_hw)
    hw_rem = HW - (hw_tiles - 1) * t_hw if HW % t_hw != 0 else 0
    acc_lanes = 128 if t_hw % 128 == 0 else t_hw
    dtype_bytes = jnp.dtype(x.dtype).itemsize

    # explicit scoped-VMEM cap: ample for ~4 MiB blocks double-buffered,
    # safe on v7x (64 MiB physical) as well as v5e/v6e (128 MiB).
    vmem_cap = 32 * 1024 * 1024

    # ---- pass 1: adaptive average pool to (1, 1), i.e. per-row mean --------
    pooled = pl.pallas_call(
        _make_pool_mean_kernel(HW, t_hw, hw_rem),
        out_shape=jax.ShapeDtypeStruct((rows, 1), jnp.float32),
        grid_spec=pltpu.PrefetchScalarGridSpec(
            num_scalar_prefetch=0,
            grid=(row_tiles, hw_tiles),               # reduction axis last
            in_specs=[pl.BlockSpec((t_r, t_hw), lambda i, j: (i, j))],
            out_specs=pl.BlockSpec((t_r, 1), lambda i, j: (i, 0)),
            scratch_shapes=[pltpu.VMEM((t_r, acc_lanes), jnp.float32)],
        ),
        compiler_params=pltpu.CompilerParams(
            dimension_semantics=("parallel", "arbitrary"),
            vmem_limit_bytes=vmem_cap,
        ),
        cost_estimate=pl.CostEstimate(
            flops=rows * HW,
            transcendentals=0,
            bytes_accessed=rows * HW * dtype_bytes + rows * 4,
        ),
    )(x2d)

    # ---- 1x1 conv on the pooled (N, C) vector: tiny matmul, done once ------
    w2d = weight.reshape(C, C).astype(jnp.float32)           # (out_ch, in_ch)
    y = pooled.reshape(N, C) @ w2d.T + bias.astype(jnp.float32)[None, :]
    y2d = y.reshape(rows, 1)                                  # (N*C, 1) f32

    # ---- pass 2: bilinear upsample of 1x1 (align_corners=False) == const ---
    out2d = pl.pallas_call(
        _broadcast_kernel,
        out_shape=jax.ShapeDtypeStruct((rows, HW), x.dtype),
        grid_spec=pltpu.PrefetchScalarGridSpec(
            num_scalar_prefetch=0,
            grid=(row_tiles, hw_tiles),
            in_specs=[pl.BlockSpec((t_r, 1), lambda i, j: (i, 0))],
            out_specs=pl.BlockSpec((t_r, t_hw), lambda i, j: (i, j)),
        ),
        compiler_params=pltpu.CompilerParams(
            dimension_semantics=("parallel", "parallel"),
            vmem_limit_bytes=vmem_cap,
        ),
        cost_estimate=pl.CostEstimate(
            flops=0,
            transcendentals=0,
            bytes_accessed=rows * HW * dtype_bytes + rows * 4,
        ),
    )(y2d)

    return out2d.reshape(N, C, H, W)


# ------------------------------- reference ----------------------------------

def _reference(x, weight, bias):
    C = x.shape[1]
    pooled = jnp.mean(x, axis=(2, 3))                          # (N, C)
    y = pooled @ weight.reshape(C, C).T + bias                 # (N, C)
    return jnp.broadcast_to(y[:, :, None, None], x.shape)


if __name__ == "__main__":
    key = jax.random.PRNGKey(0)
    kx, kw, kb = jax.random.split(key, 3)

    N, C, H, W = 2, 4, 16, 16
    x = jax.random.normal(kx, (N, C, H, W), dtype=jnp.float32)

    # deterministic synthetic Conv2d(C, C, 1, 1) parameters
    fan_in = C
    bound = 1.0 / jnp.sqrt(fan_in)
    weight = jax.random.uniform(kw, (C, C, 1, 1), jnp.float32, -bound, bound)
    bias = jax.random.uniform(kb, (C,), jnp.float32, -bound, bound)

    out = image_pool_forward(x, weight, bias)
    out = jax.block_until_ready(out)

    ref = _reference(x, weight, bias)
    assert out.shape == (N, C, H, W)
    assert jnp.allclose(out, ref, atol=1e-5, rtol=1e-5)

    # extra check: non-128-aligned spatial size exercises the masked tail path
    x2 = jax.random.normal(kx, (N, C, 12, 12), dtype=jnp.float32)
    out2 = jax.block_until_ready(image_pool_forward(x2, weight, bias))
    assert jnp.allclose(out2, _reference(x2, weight, bias), atol=1e-5, rtol=1e-5)

    print("KERNEL_OK")
</pallas_src>

<mosaic_0001>
module attributes {stable_mosaic.version = 11 : i64} {
  func.func @kernel(%arg0: i32, %arg1: i32, %arg2: memref<8x256xf32, #tpu.memory_space<vmem>>, %arg3: memref<8x1xf32, #tpu.memory_space<vmem>>, %arg4: memref<8x128xf32, #tpu.memory_space<vmem>>) attributes {dimension_semantics = [#tpu.dimension_semantics<parallel>, #tpu.dimension_semantics<arbitrary>], iteration_bounds = array<i64: 1, 1>, scalar_prefetch = 0 : i64, scratch_operands = 1 : i64, tpu.core_type = #tpu.core_type<tc>, window_params = [{transform_indices = @transform_0, window_bounds = array<i64: 8, 256>}, {transform_indices = @transform_1, window_bounds = array<i64: 8, 1>}]} {
    %c0_i32 = arith.constant 0 : i32
    %0 = arith.cmpi eq, %arg1, %c0_i32 : i32
    %1 = arith.extui %0 : i1 to i32
    %c0_i32_0 = arith.constant 0 : i32
    %2 = arith.cmpi ne, %1, %c0_i32_0 : i32
    scf.if %2 {
      %cst = arith.constant 0.000000e+00 : f32
      %14 = vector.broadcast %cst : f32 to vector<8x128xf32>
      %c0_13 = arith.constant 0 : index
      %c0_14 = arith.constant 0 : index
      %15 = vector.load %arg4[%c0_13, %c0_14] : memref<8x128xf32, #tpu.memory_space<vmem>>, vector<8x128xf32>
      tpu.vector_store %arg4[%c0_13, %c0_14], %14 {strides = array<i32>} : memref<8x128xf32, #tpu.memory_space<vmem>>, vector<8x128xf32>,
    } else {
    }
    %c0 = arith.constant 0 : index
    %c0_1 = arith.constant 0 : index
    %3 = vector.load %arg4[%c0, %c0_1] : memref<8x128xf32, #tpu.memory_space<vmem>>, vector<8x128xf32>
    %c0_2 = arith.constant 0 : index
    %c0_3 = arith.constant 0 : index
    %4 = vector.load %arg2[%c0_2, %c0_3] : memref<8x256xf32, #tpu.memory_space<vmem>>, vector<8x128xf32>
    %5 = arith.addf %3, %4 : vector<8x128xf32>
    %c0_4 = arith.constant 0 : index
    %c0_5 = arith.constant 0 : index
    %6 = vector.load %arg4[%c0_4, %c0_5] : memref<8x128xf32, #tpu.memory_space<vmem>>, vector<8x128xf32>
    tpu.vector_store %arg4[%c0_4, %c0_5], %5 {strides = array<i32>} : memref<8x128xf32, #tpu.memory_space<vmem>>, vector<8x128xf32>,
    %c0_6 = arith.constant 0 : index
    %c0_7 = arith.constant 0 : index
    %7 = vector.load %arg4[%c0_6, %c0_7] : memref<8x128xf32, #tpu.memory_space<vmem>>, vector<8x128xf32>
    %c0_8 = arith.constant 0 : index
    %c128 = arith.constant 128 : index
    %8 = vector.load %arg2[%c0_8, %c128] : memref<8x256xf32, #tpu.memory_space<vmem>>, vector<8x128xf32>
    %9 = arith.addf %7, %8 : vector<8x128xf32>
    %c0_9 = arith.constant 0 : index
    %c0_10 = arith.constant 0 : index
    %10 = vector.load %arg4[%c0_9, %c0_10] : memref<8x128xf32, #tpu.memory_space<vmem>>, vector<8x128xf32>
    tpu.vector_store %arg4[%c0_9, %c0_10], %9 {strides = array<i32>} : memref<8x128xf32, #tpu.memory_space<vmem>>, vector<8x128xf32>,
    %c0_i32_11 = arith.constant 0 : i32
    %11 = arith.cmpi eq, %arg1, %c0_i32_11 : i32
    %12 = arith.extui %11 : i1 to i32
    %c0_i32_12 = arith.constant 0 : i32
    %13 = arith.cmpi ne, %12, %c0_i32_12 : i32
    scf.if %13 {
      %c0_13 = arith.constant 0 : index
      %c0_14 = arith.constant 0 : index
      %14 = vector.load %arg4[%c0_13, %c0_14] : memref<8x128xf32, #tpu.memory_space<vmem>>, vector<8x128xf32>
      %cst = arith.constant dense<0.000000e+00> : vector<8xf32>
      %15 = vector.multi_reduction <add>, %14, %cst [1] : vector<8x128xf32> to vector<8xf32>
      %16 = vector.shape_cast %15 : vector<8xf32> to vector<8x1xf32>
      %cst_15 = arith.constant 3.906250e-03 : f32
      %17 = vector.broadcast %cst_15 : f32 to vector<8x1xf32>
      %18 = arith.mulf %16, %17 : vector<8x1xf32>
      %c0_16 = arith.constant 0 : index
      %c0_17 = arith.constant 0 : index
      %19 = vector.load %arg3[%c0_16, %c0_17] : memref<8x1xf32, #tpu.memory_space<vmem>>, vector<8x1xf32>
      tpu.vector_store %arg3[%c0_16, %c0_17], %18 {strides = array<i32>} : memref<8x1xf32, #tpu.memory_space<vmem>>, vector<8x1xf32>,
    } else {
    }
    return
  }
  func.func @transform_0(%arg0: i32, %arg1: i32) -> (i32, i32) {
    %c0_i32 = arith.constant 0 : i32
    return %arg0, %arg1 : i32, i32
  }
  func.func @transform_1(%arg0: i32, %arg1: i32) -> (i32, i32) {
    %c0_i32 = arith.constant 0 : i32
    %c0_i32_0 = arith.constant 0 : i32
    return %arg0, %c0_i32 : i32, i32
  }
}

</mosaic_0001>

<llo_original>
// kernel: tpu_custom_call.1
$region0: #{tpu_custom_call.1}
  #allocation0 [shape = 'u32[]', space=smem, size = 0x4, offset = 0x4, fixed_abs, tag = 'smem constant byte address 0x4 - core index']
  #allocation1 [shape = 'u32[72,128]{1,0:T(1,128)}', space=vmem, size = 0x9000, scoped, tag = 'internal scratch']
  #allocation2 [shape = 'f32[8,128]{1,0:T(8,128)}', space=vmem, size = 0x1000, scoped, tag = 'scratch operand']
  %s0 = inlined_call_operand.hbm [shape: f32[8,256], index: 0, kind: input, shape index: {}]
  %s1 = inlined_call_operand.vmem [shape: f32[8,1], index: 1, kind: output, shape index: {}]
  %s2 = sld [smem:[#allocation0]]
  $region26: #{tpu_custom_call.1} parent=0
    _
  %s4 = ssub.s32 1, %s2
  %s5 = scalar_select 0, %s4, %s2
  $region1: #{tpu_custom_call.1} parent=0
    #allocation3 [shape = 'u8[8192]{0}', space=vmem, size = 0x2000, scoped, tag = 'input window, operand 0, single buffered']
    #allocation4 [shape = 's32[1]{0}', space=sflag, size = 0x4, scoped, tag = 'scoped memory for tpu_custom_call.1']
    %6 = vsyncpa [#allocation4], 0
    // Predicated region
    $region2: #{tpu_custom_call.1} parent=1 // pred_check
      _
    $region3: #{tpu_custom_call.1} parent=1 // pred_check_branch
      %8 = sbr.rel (0) target = $region5
    $region4: #{tpu_custom_call.1} parent=1 // pred_region
      %10 = vsyncadd [#allocation4], 0
      %s12 = sshll.u32 %s0, 4
      %s13 = int_to_ptr.hbm [resolvable:$true] %s12
      %s14 = sshll.u32 [#allocation3], 4
      %s15 = int_to_ptr.vmem [resolvable:$true] %s14
      %17 = dma.hbm_to_vmem [thread:$0]  %s13, 256, %s15, [#allocation4]
    $region5: #{tpu_custom_call.1} parent=1 // pred_fallthru
      _
    // Predicated region
    $region6: #{tpu_custom_call.1} parent=1 // pred_check
      _
    $region7: #{tpu_custom_call.1} parent=1 // pred_check_branch
      %19 = sbr.rel (0) target = $region9
    $region8: #{tpu_custom_call.1} parent=1 // pred_region
      %21 = dma.done [#allocation4], 256
    $region9: #{tpu_custom_call.1} parent=1 // pred_fallthru
      _
    %p22 = scmp.eq.s32.totalorder 0, 0
    // Predicated region
    $region10: #{tpu_custom_call.1} parent=1 // pred_check
      %p23 = pneg %p22
    $region11: #{tpu_custom_call.1} parent=1 // pred_check_branch
      %25 = sbr.rel (%p23) target = $region13
    $region12: #{tpu_custom_call.1} parent=1 // pred_region
      %26 = vst [vmem:[#allocation2] sm:$0xff] 0.0
    $region13: #{tpu_custom_call.1} parent=1 // pred_fallthru
      _
    %v27 = vld [vmem:[#allocation2] sm:$0xff]
    %v28 = vld [vmem:[#allocation3] sm:$0xff]
    %v29 = vadd.f32 %v27, %v28
    %30 = vst [vmem:[#allocation2] sm:$0xff] %v29
    %v31 = vld [vmem:[#allocation2] sm:$0xff]
    %v32 = vld [vmem:[#allocation3 + $0x8] sm:$0xff]
    %v33 = vadd.f32 %v31, %v32
    %34 = vst [vmem:[#allocation2] sm:$0xff] %v33
    // Predicated region
    $region14: #{tpu_custom_call.1} parent=1 // pred_check
      %p35 = pneg %p22
    $region15: #{tpu_custom_call.1} parent=1 // pred_check_branch
      %37 = sbr.rel (%p35) target = $region17
    $region16: #{tpu_custom_call.1} parent=1 // pred_region
      %v38 = vld [vmem:[#allocation2] sm:$0xff]
      %39 = vadd.xlane.f32.xlu0 %v38
      %v40 = vpop.xlane.xlu0 %39
      %v41 = vmul.f32 %v40, 0.00390625
      %vm42 = vcmask 7168
      %43 = vst.msk [vmem:[%s1] sm:$0xff] %vm42, %v41
    $region17: #{tpu_custom_call.1} parent=1 // pred_fallthru
      _
    // Predicated region
    $region18: #{tpu_custom_call.1} parent=1 // pred_check
      _
    $region19: #{tpu_custom_call.1} parent=1 // pred_check_branch
      %45 = sbr.rel (0) target = $region21
    $region20: #{tpu_custom_call.1} parent=1 // pred_region
      _
    $region21: #{tpu_custom_call.1} parent=1 // pred_fallthru
      _
    // Predicated region
    $region22: #{tpu_custom_call.1} parent=1 // pred_check
      _
    $region23: #{tpu_custom_call.1} parent=1 // pred_check_branch
      %47 = sbr.rel (0) target = $region25
    $region24: #{tpu_custom_call.1} parent=1 // pred_region
      _
    $region25: #{tpu_custom_call.1} parent=1 // pred_fallthru
      _
    %48 = vsyncpa [#allocation4], 1

</llo_original>
